<compile_context>
chip_gen: v6e
topology: v6e:2x2x1
jax: 0.10.0
libtpu: 0.0.40
codegen_flags: <defaults>
</compile_context>

<pallas_src>
import jax
import jax.numpy as jnp
from jax.experimental import pallas as pl
from jax.experimental.pallas import tpu as pltpu


def _round_up(x, m):
    return ((x + m - 1) // m) * m


def _window_sum_matrix(padded_size, win_size, stride, out_size, dtype):
    # M[i, h] = 1.0 iff i*stride <= h < i*stride + win_size.  Valid windows end
    # at the original size, so zero-padded rows/cols of x never contribute.
    h = jnp.arange(padded_size)[None, :]
    start = (jnp.arange(out_size) * stride)[:, None]
    return ((h >= start) & (h < start + win_size)).astype(dtype)


def fix_cnn(x, *, win_size=16):
    """x: (B, 1, H, W). Equivalent to F.conv2d(x, ones(1,1,ws,ws), stride=ws//2)."""
    B, C, H, W = x.shape
    assert C == 1, "FixCNN uses a single-input-channel all-ones kernel"
    assert H >= win_size and W >= win_size, "input smaller than conv window"
    stride = win_size // 2
    Ho = (H - win_size) // stride + 1
    Wo = (W - win_size) // stride + 1

    # MXU has no integer path on v7x -> compute in float.
    cd = x.dtype if jnp.issubdtype(x.dtype, jnp.floating) else jnp.float32
    x = x.astype(cd)
    itemsize = jnp.dtype(cd).itemsize

    # ---- tiling -------------------------------------------------------------
    Hp = _round_up(H, 8)                       # sublane-aligned image height
    TW = W if W <= 512 else 512                # contraction (width) tile
    Wp = W if W <= 512 else _round_up(W, TW)
    nk = Wp // TW

    # Images per grid step: aim for a lane-dense (>=128 lane) output slab, with
    # a conservative VMEM budget for the double-buffered x block (fits v5e's
    # small scoped default and v7x's 64 MiB physical VMEM).
    lane_tb = -(-128 // Wo)
    vmem_tb = max(1, (6 << 20) // (Hp * TW * itemsize))
    TB = int(max(1, min(B, lane_tb, vmem_tb, 64)))
    nb = -(-B // TB)
    B_pad = nb * TB

    # ---- host-side data prep (layout plumbing only) --------------------------
    x3 = jnp.pad(x[:, 0], ((0, B_pad - B), (0, Hp - H), (0, Wp - W)))
    x2 = x3.reshape(B_pad * Hp, Wp)                          # batch folded into M
    R = _window_sum_matrix(Hp, win_size, stride, Ho, cd)          # (Ho, Hp)
    S = _window_sum_matrix(Wp, win_size, stride, Wo, cd).T        # (Wp, Wo)
    # TODO(synk): on v6e/v7x, casting x/R/S to bfloat16 (f32 accumulation) would
    # roughly double MXU throughput at ~1e-3 relative error vs. the f32 path.

    def kernel(x_ref, r_ref, s_ref, o_ref, acc_ref):
        k = pl.program_id(1)

        @pl.when(k == 0)
        def _init():
            acc_ref[...] = jnp.zeros_like(acc_ref)

        # Column window-sums of TB batch-folded images: (TB*Hp, TW) @ (TW, Wo).
        acc_ref[...] += jnp.dot(x_ref[...], s_ref[...],
                                preferred_element_type=jnp.float32)

        @pl.when(k == pl.num_programs(1) - 1)
        def _finalize():
            acc = acc_ref[...]                 # (TB*Hp, Wo), f32
            r = r_ref[...]                     # (Ho, Hp)
            # Row window-sums per image, packed into the lane-dense (Ho, TB*Wo)
            # output slab.  Static unrolled loop; tiny vs. the first matmul.
            for b in range(TB):
                o_ref[:, b * Wo:(b + 1) * Wo] = jnp.dot(
                    r, acc[b * Hp:(b + 1) * Hp, :],
                    preferred_element_type=jnp.float32).astype(o_ref.dtype)

    cost = pl.CostEstimate(
        flops=2 * B_pad * (Hp * Wp * Wo + Ho * Hp * Wo),
        transcendentals=0,
        bytes_accessed=(x2.size + R.size + S.size + nb * Ho * TB * Wo) * itemsize,
    )

    out_slab = pl.pallas_call(
        kernel,
        out_shape=jax.ShapeDtypeStruct((nb, Ho, TB * Wo), cd),
        grid_spec=pltpu.PrefetchScalarGridSpec(
            num_scalar_prefetch=0,
            grid=(nb, nk),                                   # reduction axis last
            in_specs=[
                pl.BlockSpec((TB * Hp, TW), lambda g, k: (g, k)),
                pl.BlockSpec((Ho, Hp), lambda g, k: (0, 0)),     # resident
                pl.BlockSpec((TW, Wo), lambda g, k: (k, 0)),
            ],
            out_specs=pl.BlockSpec((None, Ho, TB * Wo), lambda g, k: (g, 0, 0)),
            scratch_shapes=[pltpu.VMEM((TB * Hp, Wo), jnp.float32)],
        ),
        compiler_params=pltpu.CompilerParams(
            dimension_semantics=("parallel", "arbitrary"),
            vmem_limit_bytes=32 << 20,
        ),
        cost_estimate=cost,
    )(x2, R, S)

    out = (out_slab.reshape(nb, Ho, TB, Wo)
           .transpose(0, 2, 1, 3)
           .reshape(B_pad, Ho, Wo)[:B]
           .reshape(B, 1, Ho, Wo))
    return out


def fix_cnn_ref(x, win_size=16):
    """Direct sliding-window sum reference (ones-weight conv, no bias)."""
    stride = win_size // 2
    B, C, H, W = x.shape
    Ho = (H - win_size) // stride + 1
    Wo = (W - win_size) // stride + 1
    out = jnp.zeros((B, C, Ho, Wo), x.dtype)
    for i in range(Ho):
        for j in range(Wo):
            win = x[:, :, i * stride:i * stride + win_size,
                          j * stride:j * stride + win_size]
            out = out.at[:, :, i, j].set(win.sum(axis=(2, 3)))
    return out


if __name__ == "__main__":
    win_size = 16
    B, C, H, W = 2, 1, 32, 32     # -> output (2, 1, 3, 3) with stride 8

    key = jax.random.PRNGKey(0)
    x = jax.random.normal(key, (B, C, H, W), dtype=jnp.float32)

    out = jax.block_until_ready(fix_cnn(x, win_size=win_size))

    ref = fix_cnn_ref(x, win_size=win_size)
    assert out.shape == ref.shape, (out.shape, ref.shape)
    assert jnp.allclose(out, ref, atol=1e-3, rtol=1e-4), \
        float(jnp.max(jnp.abs(out - ref)))

    print("KERNEL_OK")
</pallas_src>

<mosaic_0001>
module attributes {stable_mosaic.version = 11 : i64} {
  func.func @kernel(%arg0: i32, %arg1: i32, %arg2: memref<64x32xf32, #tpu.memory_space<vmem>>, %arg3: memref<3x32xf32, #tpu.memory_space<vmem>>, %arg4: memref<32x3xf32, #tpu.memory_space<vmem>>, %arg5: memref<1x3x6xf32, #tpu.memory_space<vmem>>, %arg6: memref<64x3xf32, #tpu.memory_space<vmem>>) attributes {dimension_semantics = [#tpu.dimension_semantics<parallel>, #tpu.dimension_semantics<arbitrary>], iteration_bounds = array<i64: 1, 1>, scalar_prefetch = 0 : i64, scratch_operands = 1 : i64, tpu.core_type = #tpu.core_type<tc>, window_params = [{transform_indices = @transform_0, window_bounds = array<i64: 64, 32>}, {pipeline_mode = #tpu.pipeline_mode<synchronous>, transform_indices = @transform_1, window_bounds = array<i64: 3, 32>}, {transform_indices = @transform_2, window_bounds = array<i64: 32, 3>}, {transform_indices = @transform_3, window_bounds = array<i64: 1, 3, 6>}]} {
    %c0_i32 = arith.constant 0 : i32
    %0 = arith.cmpi eq, %arg1, %c0_i32 : i32
    %1 = arith.extui %0 : i1 to i32
    %c0_i32_0 = arith.constant 0 : i32
    %2 = arith.cmpi ne, %1, %c0_i32_0 : i32
    scf.if %2 {
      %cst_10 = arith.constant 0.000000e+00 : f32
      %12 = vector.broadcast %cst_10 : f32 to vector<64x3xf32>
      %c0_11 = arith.constant 0 : index
      %c0_12 = arith.constant 0 : index
      %13 = vector.load %arg6[%c0_11, %c0_12] : memref<64x3xf32, #tpu.memory_space<vmem>>, vector<64x3xf32>
      tpu.vector_store %arg6[%c0_11, %c0_12], %12 {strides = array<i32>} : memref<64x3xf32, #tpu.memory_space<vmem>>, vector<64x3xf32>,
    } else {
    }
    %c0 = arith.constant 0 : index
    %c0_1 = arith.constant 0 : index
    %3 = vector.load %arg6[%c0, %c0_1] : memref<64x3xf32, #tpu.memory_space<vmem>>, vector<64x3xf32>
    %c0_2 = arith.constant 0 : index
    %c0_3 = arith.constant 0 : index
    %4 = vector.load %arg2[%c0_2, %c0_3] : memref<64x32xf32, #tpu.memory_space<vmem>>, vector<64x32xf32>
    %c0_4 = arith.constant 0 : index
    %c0_5 = arith.constant 0 : index
    %5 = vector.load %arg4[%c0_4, %c0_5] : memref<32x3xf32, #tpu.memory_space<vmem>>, vector<32x3xf32>
    %cst = arith.constant dense<0.000000e+00> : vector<64x3xf32>
    %6 = tpu.matmul %4, %5, %cst {dimension_numbers = #tpu.dot_dimension_numbers<[1], [0], [0], [1], [0, 0, 1, 1], [], []>} : vector<64x32xf32>, vector<32x3xf32>, vector<64x3xf32> -> vector<64x3xf32>
    %7 = arith.addf %3, %6 : vector<64x3xf32>
    %c0_6 = arith.constant 0 : index
    %c0_7 = arith.constant 0 : index
    %8 = vector.load %arg6[%c0_6, %c0_7] : memref<64x3xf32, #tpu.memory_space<vmem>>, vector<64x3xf32>
    tpu.vector_store %arg6[%c0_6, %c0_7], %7 {strides = array<i32>} : memref<64x3xf32, #tpu.memory_space<vmem>>, vector<64x3xf32>,
    %c0_i32_8 = arith.constant 0 : i32
    %9 = arith.cmpi eq, %arg1, %c0_i32_8 : i32
    %10 = arith.extui %9 : i1 to i32
    %c0_i32_9 = arith.constant 0 : i32
    %11 = arith.cmpi ne, %10, %c0_i32_9 : i32
    scf.if %11 {
      %c0_10 = arith.constant 0 : index
      %c0_11 = arith.constant 0 : index
      %12 = vector.load %arg6[%c0_10, %c0_11] : memref<64x3xf32, #tpu.memory_space<vmem>>, vector<64x3xf32>
      %c0_12 = arith.constant 0 : index
      %c0_13 = arith.constant 0 : index
      %13 = vector.load %arg3[%c0_12, %c0_13] : memref<3x32xf32, #tpu.memory_space<vmem>>, vector<3x32xf32>
      %14 = vector.extract_strided_slice %12 {offsets = [0, 0], sizes = [32, 3], strides = [1, 1]} : vector<64x3xf32> to vector<32x3xf32>
      %cst_14 = arith.constant dense<0.000000e+00> : vector<3x3xf32>
      %15 = tpu.matmul %13, %14, %cst_14 {dimension_numbers = #tpu.dot_dimension_numbers<[1], [0], [0], [1], [0, 0, 1, 1], [], []>} : vector<3x32xf32>, vector<32x3xf32>, vector<3x3xf32> -> vector<3x3xf32>
      %c0_15 = arith.constant 0 : index
      %c0_16 = arith.constant 0 : index
      %c0_17 = arith.constant 0 : index
      %16 = vector.load %arg5[%c0_15, %c0_16, %c0_17] : memref<1x3x6xf32, #tpu.memory_space<vmem>>, vector<1x3x3xf32>
      %17 = vector.shape_cast %16 : vector<1x3x3xf32> to vector<3x3xf32>
      %18 = vector.shape_cast %15 : vector<3x3xf32> to vector<1x3x3xf32>
      tpu.vector_store %arg5[%c0_15, %c0_16, %c0_17], %18 {strides = array<i32>} : memref<1x3x6xf32, #tpu.memory_space<vmem>>, vector<1x3x3xf32>,
      %19 = vector.extract_strided_slice %12 {offsets = [32, 0], sizes = [32, 3], strides = [1, 1]} : vector<64x3xf32> to vector<32x3xf32>
      %cst_18 = arith.constant dense<0.000000e+00> : vector<3x3xf32>
      %20 = tpu.matmul %13, %19, %cst_18 {dimension_numbers = #tpu.dot_dimension_numbers<[1], [0], [0], [1], [0, 0, 1, 1], [], []>} : vector<3x32xf32>, vector<32x3xf32>, vector<3x3xf32> -> vector<3x3xf32>
      %c0_19 = arith.constant 0 : index
      %c0_20 = arith.constant 0 : index
      %c3 = arith.constant 3 : index
      %21 = vector.load %arg5[%c0_19, %c0_20, %c3] : memref<1x3x6xf32, #tpu.memory_space<vmem>>, vector<1x3x3xf32>
      %22 = vector.shape_cast %21 : vector<1x3x3xf32> to vector<3x3xf32>
      %23 = vector.shape_cast %20 : vector<3x3xf32> to vector<1x3x3xf32>
      tpu.vector_store %arg5[%c0_19, %c0_20, %c3], %23 {strides = array<i32>} : memref<1x3x6xf32, #tpu.memory_space<vmem>>, vector<1x3x3xf32>,
    } else {
    }
    return
  }
  func.func @transform_0(%arg0: i32, %arg1: i32) -> (i32, i32) {
    %c0_i32 = arith.constant 0 : i32
    return %arg0, %arg1 : i32, i32
  }
  func.func @transform_1(%arg0: i32, %arg1: i32) -> (i32, i32) {
    %c0_i32 = arith.constant 0 : i32
    %c0_i32_0 = arith.constant 0 : i32
    %c0_i32_1 = arith.constant 0 : i32
    return %c0_i32, %c0_i32_0 : i32, i32
  }
  func.func @transform_2(%arg0: i32, %arg1: i32) -> (i32, i32) {
    %c0_i32 = arith.constant 0 : i32
    %c0_i32_0 = arith.constant 0 : i32
    return %arg1, %c0_i32 : i32, i32
  }
  func.func @transform_3(%arg0: i32, %arg1: i32) -> (i32, i32, i32) {
    %c0_i32 = arith.constant 0 : i32
    %c0_i32_0 = arith.constant 0 : i32
    %c0_i32_1 = arith.constant 0 : i32
    return %arg0, %c0_i32, %c0_i32_0 : i32, i32, i32
  }
}

</mosaic_0001>

<llo_original>
// kernel: tpu_custom_call.1
$region0: #{tpu_custom_call.1}
  #allocation0 [shape = 'u32[]', space=smem, size = 0x4, offset = 0x4, fixed_abs, tag = 'smem constant byte address 0x4 - core index']
  #allocation1 [shape = 'u32[144,128]{1,0:T(1,128)}', space=vmem, size = 0x12000, scoped, tag = 'internal scratch']
  #allocation2 [shape = 'f32[64,3]{1,0:T(8,128)}', space=vmem, size = 0x8000, scoped, tag = 'scratch operand']
  %s0 = inlined_call_operand.vmem [shape: f32[64,32], index: 0, kind: input, shape index: {}]
  %s1 = inlined_call_operand.vmem [shape: f32[3,32], index: 1, kind: input, shape index: {}]
  %s2 = inlined_call_operand.vmem [shape: f32[32,3], index: 2, kind: input, shape index: {}]
  %s3 = inlined_call_operand.vmem [shape: f32[1,3,6], index: 3, kind: output, shape index: {}]
  %s4 = sld [smem:[#allocation0]]
  $region30: #{tpu_custom_call.1} parent=0
    _
  %s6 = ssub.s32 1, %s4
  %s7 = scalar_select 0, %s6, %s4
  // Predicated region
  $region2: #{tpu_custom_call.1} parent=0 // pred_check
    _
  $region3: #{tpu_custom_call.1} parent=0 // pred_check_branch
    %9 = sbr.rel (0) target = $region5
  $region4: #{tpu_custom_call.1} parent=0 // pred_region
    _
  $region5: #{tpu_custom_call.1} parent=0 // pred_fallthru
    _
  // Predicated region
  $region6: #{tpu_custom_call.1} parent=0 // pred_check
    _
  $region7: #{tpu_custom_call.1} parent=0 // pred_check_branch
    %11 = sbr.rel (0) target = $region9
  $region8: #{tpu_custom_call.1} parent=0 // pred_region
    _
  $region9: #{tpu_custom_call.1} parent=0 // pred_fallthru
    _
  // Predicated region
  $region10: #{tpu_custom_call.1} parent=0 // pred_check
    _
  $region11: #{tpu_custom_call.1} parent=0 // pred_check_branch
    %13 = sbr.rel (0) target = $region13
  $region12: #{tpu_custom_call.1} parent=0 // pred_region
    _
  $region13: #{tpu_custom_call.1} parent=0 // pred_fallthru
    _
  %p14 = scmp.eq.s32.totalorder 0, 0
  // Predicated region
  $region14: #{tpu_custom_call.1} parent=0 // pred_check
    %p15 = pneg %p14
  $region15: #{tpu_custom_call.1} parent=0 // pred_check_branch
    %17 = sbr.rel (%p15) target = $region17
  $region16: #{tpu_custom_call.1} parent=0 // pred_region
    %vm18 = vcmask 23552
    %19 = vst.msk [vmem:[#allocation2] sm:$0xff] %vm18, 0.0
    %20 = vst.msk [vmem:[#allocation2 + $0x8] sm:$0xff] %vm18, 0.0
    %21 = vst.msk [vmem:[#allocation2 + $0x10] sm:$0xff] %vm18, 0.0
    %22 = vst.msk [vmem:[#allocation2 + $0x18] sm:$0xff] %vm18, 0.0
    %23 = vst.msk [vmem:[#allocation2 + $0x20] sm:$0xff] %vm18, 0.0
    %24 = vst.msk [vmem:[#allocation2 + $0x28] sm:$0xff] %vm18, 0.0
    %25 = vst.msk [vmem:[#allocation2 + $0x30] sm:$0xff] %vm18, 0.0
    %26 = vst.msk [vmem:[#allocation2 + $0x38] sm:$0xff] %vm18, 0.0
  $region17: #{tpu_custom_call.1} parent=0 // pred_fallthru
    _
  %v27 = vld [vmem:[#allocation2] sm:$0xff]
  %v28 = vld [vmem:[#allocation2 + $0x8] sm:$0xff]
  %v29 = vld [vmem:[#allocation2 + $0x10] sm:$0xff]
  %v30 = vld [vmem:[#allocation2 + $0x18] sm:$0xff]
  %v31 = vld [vmem:[#allocation2 + $0x20] sm:$0xff]
  %v32 = vld [vmem:[#allocation2 + $0x28] sm:$0xff]
  %v33 = vld [vmem:[#allocation2 + $0x30] sm:$0xff]
  %v34 = vld [vmem:[#allocation2 + $0x38] sm:$0xff]
  %v35 = vld [vmem:[%s0] sm:$0xff]
  %v36 = vld [vmem:[%s0 + $0x8] sm:$0xff]
  %v37 = vld [vmem:[%s0 + $0x10] sm:$0xff]
  %v38 = vld [vmem:[%s0 + $0x18] sm:$0xff]
  %v39 = vld [vmem:[%s0 + $0x20] sm:$0xff]
  %v40 = vld [vmem:[%s0 + $0x28] sm:$0xff]
  %v41 = vld [vmem:[%s0 + $0x30] sm:$0xff]
  %v42 = vld [vmem:[%s0 + $0x38] sm:$0xff]
  %v43 = vld [vmem:[%s2] sm:$0xff]
  %v44 = vld [vmem:[%s2 + $0x8] sm:$0xff]
  %v45 = vld [vmem:[%s2 + $0x10] sm:$0xff]
  %v46 = vld [vmem:[%s2 + $0x18] sm:$0xff]
  %vm47 = vcmask 261120
  %v49 = vsel %vm47, %v35, 0
  %v52 = vsel %vm47, %v36, 0
  %v55 = vsel %vm47, %v37, 0
  %v58 = vsel %vm47, %v38, 0
  %v61 = vsel %vm47, %v39, 0
  %v64 = vsel %vm47, %v40, 0
  %v67 = vsel %vm47, %v41, 0
  %v70 = vsel %vm47, %v42, 0
  %72 = vmatprep.subr.mxu0 0.0
  %73 = vmatpush1.msra.mxu0 0.0
  %74 = vmatprep.subr.mxu0 0.0
  %75 = vmatpush1.msra.mxu0 0.0
  %76 = vmatprep.subr.mxu0 0.0
  %77 = vmatpush1.msra.mxu0 0.0
  %78 = vmatprep.subr.mxu0 0.0
  %79 = vmatpush1.msra.mxu0 0.0
  %80 = vmatprep.subr.mxu0 0.0
  %81 = vmatpush1.msra.mxu0 0.0
  %82 = vmatprep.subr.mxu0 0.0
  %83 = vmatpush1.msra.mxu0 0.0
  %84 = vmatprep.subr.mxu0 0.0
  %85 = vmatpush1.msra.mxu0 0.0
  %86 = vmatprep.subr.mxu0 0.0
  %87 = vmatpush1.msra.mxu0 0.0
  %88 = vmatprep.subr.mxu0 0.0
  %89 = vmatpush1.msra.mxu0 0.0
  %90 = vmatprep.subr.mxu0 0.0
  %91 = vmatpush1.msra.mxu0 0.0
  %92 = vmatprep.subr.mxu0 0.0
  %93 = vmatpush1.msra.mxu0 0.0
  %94 = vmatprep.subr.mxu0 0.0
  %95 = vmatpush1.msra.mxu0 0.0
  %96 = vmatprep.subr.mxu0 0.0
  %97 = vmatpush1.msra.mxu0 %v46
  %98 = vmatprep.subr.mxu0 0.0
  %99 = vmatpush1.msra.mxu0 %v45
  %100 = vmatprep.subr.mxu0 0.0
  %101 = vmatpush1.msra.mxu0 %v44
  %102 = vmatprep.subr.mxu0 0.0
  %103 = vmatpush1.msra.mxu0 %v43
  %104 = vmatprep.subr.mxu0 0.0
  %105 = vmatpush2.msra.mxu0 0.0
  %106 = vmatprep.subr.mxu0 0.0
  %107 = vmatpush2.msra.mxu0 0.0
  %108 = vmatprep.subr.mxu0 0.0
  %109 = vmatpush2.msra.mxu0 0.0
  %110 = vmatprep.subr.mxu0 0.0
  %111 = vmatpush2.msra.mxu0 0.0
  %112 = vmatprep.subr.mxu0 0.0
  %113 = vmatpush2.msra.mxu0 0.0
  %114 = vmatprep.subr.mxu0 0.0
  %115 = vmatpush2.msra.mxu0 0.0
  %116 = vmatprep.subr.mxu0 0.0
  %117 = vmatpush2.msra.mxu0 0.0
  %118 = vmatprep.subr.mxu0 0.0
  %119 = vmatpush2.msra.mxu0 0.0
  %120 = vmatprep.subr.mxu0 0.0
  %121 = vmatpush2.msra.mxu0 0.0
  %122 = vmatprep.subr.mxu0 0.0
  %123 = vmatpush2.msra.mxu0 0.0
  %124 = vmatprep.subr.mxu0 0.0
  %125 = vmatpush2.msra.mxu0 0.0
  %126 = vmatprep.subr.mxu0 0.0
  %127 = vmatpush2.msra.mxu0 0.0
  %128 = vmatprep.subr.mxu0 0.0
  %129 = vmatpush2.msra.mxu0 0.0
  %130 = vmatprep.subr.mxu0 0.0
  %131 = vmatpush2.msra.mxu0 0.0
  %132 = vmatprep.subr.mxu0 0.0
  %133 = vmatpush2.msra.mxu0 0.0
  %134 = vmatprep.subr.mxu0 0.0
  %135 = vmatpush2.msra.mxu0 0.0
  %136 = vmatprep.mubr.f32.mxu0 0.0
  %137 = vmatmul.mubr.f32.gmra.mxu0 %v49
  %v138 = vpop.f32.mrf.mxu0
  %v139 = vadd.f32 0.0, %v138
  %v140 = vpop.f32.mrf.mxu0
  %141 = vmatprep.mubr.f32.mxu0 0.0
  %142 = vmatmul.mubr.f32.gmra.mxu0 %v52
  %v143 = vpop.f32.mrf.mxu0
  %v144 = vadd.f32 0.0, %v143
  %v145 = vpop.f32.mrf.mxu0
  %146 = vmatprep.mubr.f32.mxu0 0.0
  %147 = vmatmul.mubr.f32.gmra.mxu0 %v55
  %v148 = vpop.f32.mrf.mxu0
  %v149 = vadd.f32 0.0, %v148
  %v150 = vpop.f32.mrf.mxu0
  %151 = vmatprep.mubr.f32.mxu0 0.0
  %152 = vmatmul.mubr.f32.gmra.mxu0 %v58
  %v153 = vpop.f32.mrf.mxu0
  %v154 = vadd.f32 0.0, %v153
  %v155 = vpop.f32.mrf.mxu0
  %156 = vmatprep.mubr.f32.mxu0 0.0
  %157 = vmatmul.mubr.f32.gmra.mxu0 %v61
  %v158 = vpop.f32.mrf.mxu0
  %v159 = vadd.f32 0.0, %v158
  %v160 = vpop.f32.mrf.mxu0
  %161 = vmatprep.mubr.f32.mxu0 0.0
  %162 = vmatmul.mubr.f32.gmra.mxu0 %v64
  %v163 = vpop.f32.mrf.mxu0
  %v164 = vadd.f32 0.0, %v163
  %v165 = vpop.f32.mrf.mxu0
  %166 = vmatprep.mubr.f32.mxu0 0.0
  %167 = vmatmul.mubr.f32.gmra.mxu0 %v67
  %v168 = vpop.f32.mrf.mxu0
  %v169 = vadd.f32 0.0, %v168
  %v170 = vpop.f32.mrf.mxu0
  %171 = vmatprep.mubr.f32.mxu0 0.0
  %172 = vmatmul.mubr.f32.gmra.mxu0 %v70
  %v173 = vpop.f32.mrf.mxu0
  %v174 = vadd.f32 0.0, %v173
  %v175 = vpop.f32.mrf.mxu0
  %176 = vdwg.mxu0
  %v177 = vadd.f32 %v27, %v139
  %v178 = vadd.f32 %v28, %v144
  %v179 = vadd.f32 %v29, %v149
  %v180 = vadd.f32 %v30, %v154
  %v181 = vadd.f32 %v31, %v159
  %v182 = vadd.f32 %v32, %v164
  %v183 = vadd.f32 %v33, %v169
  %v184 = vadd.f32 %v34, %v174
  %vm185 = vcmask 23552
  %186 = vst.msk [vmem:[#allocation2] sm:$0xff] %vm185, %v177
  %187 = vst.msk [vmem:[#allocation2 + $0x8] sm:$0xff] %vm185, %v178
  %188 = vst.msk [vmem:[#allocation2 + $0x10] sm:$0xff] %vm185, %v179
  %189 = vst.msk [vmem:[#allocation2 + $0x18] sm:$0xff] %vm185, %v180
  %190 = vst.msk [vmem:[#allocation2 + $0x20] sm:$0xff] %vm185, %v181
  %191 = vst.msk [vmem:[#allocation2 + $0x28] sm:$0xff] %vm185, %v182
  %192 = vst.msk [vmem:[#allocation2 + $0x30] sm:$0xff] %vm185, %v183
  %193 = vst.msk [vmem:[#allocation2 + $0x38] sm:$0xff] %vm185, %v184
  // Predicated region
  $region18: #{tpu_custom_call.1} parent=0 // pred_check
    %p194 = pneg %p14
  $region19: #{tpu_custom_call.1} parent=0 // pred_check_branch
    %196 = sbr.rel (%p194) target = $region21
  $region20: #{tpu_custom_call.1} parent=0 // pred_region
    %v197 = vld [vmem:[#allocation2] sm:$0xff]
    %v198 = vld [vmem:[#allocation2 + $0x8] sm:$0xff]
    %v199 = vld [vmem:[#allocation2 + $0x10] sm:$0xff]
    %v200 = vld [vmem:[#allocation2 + $0x18] sm:$0xff]
    %v201 = vld [vmem:[#allocation2 + $0x20] sm:$0xff]
    %v202 = vld [vmem:[#allocation2 + $0x28] sm:$0xff]
    %v203 = vld [vmem:[#allocation2 + $0x30] sm:$0xff]
    %v204 = vld [vmem:[#allocation2 + $0x38] sm:$0xff]
    %v205 = vld [vmem:[%s1] sm:$0x7]
    %v207 = vsel %vm47, %v205, 0
    %209 = vmatprep.subr.mxu0 0.0
    %210 = vmatpush1.msra.mxu0 0.0
    %211 = vmatprep.subr.mxu0 0.0
    %212 = vmatpush1.msra.mxu0 0.0
    %213 = vmatprep.subr.mxu0 0.0
    %214 = vmatpush1.msra.mxu0 0.0
    %215 = vmatprep.subr.mxu0 0.0
    %216 = vmatpush1.msra.mxu0 0.0
    %217 = vmatprep.subr.mxu0 0.0
    %218 = vmatpush1.msra.mxu0 0.0
    %219 = vmatprep.subr.mxu0 0.0
    %220 = vmatpush1.msra.mxu0 0.0
    %221 = vmatprep.subr.mxu0 0.0
    %222 = vmatpush1.msra.mxu0 0.0
    %223 = vmatprep.subr.mxu0 0.0
    %224 = vmatpush1.msra.mxu0 0.0
    %225 = vmatprep.subr.mxu0 0.0
    %226 = vmatpush1.msra.mxu0 0.0
    %227 = vmatprep.subr.mxu0 0.0
    %228 = vmatpush1.msra.mxu0 0.0
    %229 = vmatprep.subr.mxu0 0.0
    %230 = vmatpush1.msra.mxu0 0.0
    %231 = vmatprep.subr.mxu0 0.0
    %232 = vmatpush1.msra.mxu0 0.0
    %233 = vmatprep.subr.mxu0 0.0
    %234 = vmatpush1.msra.mxu0 %v200
    %235 = vmatprep.subr.mxu0 0.0
    %236 = vmatpush1.msra.mxu0 %v199
    %237 = vmatprep.subr.mxu0 0.0
    %238 = vmatpush1.msra.mxu0 %v198
    %239 = vmatprep.subr.mxu0 0.0
    %240 = vmatpush1.msra.mxu0 %v197
    %241 = vmatprep.subr.mxu0 0.0
    %242 = vmatpush2.msra.mxu0 0.0
    %243 = vmatprep.subr.mxu0 0.0
    %244 = vmatpush2.msra.mxu0 0.0
    %245 = vmatprep.subr.mxu0 0.0
    %246 = vmatpush2.msra.mxu0 0.0
    %247 = vmatprep.subr.mxu0 0.0
    %248 = vmatpush2.msra.mxu0 0.0
    %249 = vmatprep.subr.mxu0 0.0
    %250 = vmatpush2.msra.mxu0 0.0
    %251 = vmatprep.subr.mxu0 0.0
    %252 = vmatpush2.msra.mxu0 0.0
    %253 = vmatprep.subr.mxu0 0.0
    %254 = vmatpush2.msra.mxu0 0.0
    %255 = vmatprep.subr.mxu0 0.0
    %256 = vmatpush2.msra.mxu0 0.0
    %257 = vmatprep.subr.mxu0 0.0
    %258 = vmatpush2.msra.mxu0 0.0
    %259 = vmatprep.subr.mxu0 0.0
    %260 = vmatpush2.msra.mxu0 0.0
    %261 = vmatprep.subr.mxu0 0.0
    %262 = vmatpush2.msra.mxu0 0.0
    %263 = vmatprep.subr.mxu0 0.0
    %264 = vmatpush2.msra.mxu0 0.0
    %265 = vmatprep.subr.mxu0 0.0
    %266 = vmatpush2.msra.mxu0 0.0
    %267 = vmatprep.subr.mxu0 0.0
    %268 = vmatpush2.msra.mxu0 0.0
    %269 = vmatprep.subr.mxu0 0.0
    %270 = vmatpush2.msra.mxu0 0.0
    %271 = vmatprep.subr.mxu0 0.0
    %272 = vmatpush2.msra.mxu0 0.0
    %273 = vmatprep.mubr.f32.mxu0 0.0
    %274 = vmatmul.mubr.f32.gmra.mxu0 %v207
    %v275 = vpop.f32.mrf.mxu0
    %v276 = vadd.f32 0.0, %v275
    %v277 = vpop.f32.mrf.mxu0
    %278 = vdwg.mxu0
    %vm279 = vcmask 18432
    %280 = vst.msk [vmem:[%s3] sm:$0x7] %vm279, %v276
    %281 = vmatprep.subr.mxu0 0.0
    %282 = vmatpush1.msra.mxu0 0.0
    %283 = vmatprep.subr.mxu0 0.0
    %284 = vmatpush1.msra.mxu0 0.0
    %285 = vmatprep.subr.mxu0 0.0
    %286 = vmatpush1.msra.mxu0 0.0
    %287 = vmatprep.subr.mxu0 0.0
    %288 = vmatpush1.msra.mxu0 0.0
    %289 = vmatprep.subr.mxu0 0.0
    %290 = vmatpush1.msra.mxu0 0.0
    %291 = vmatprep.subr.mxu0 0.0
    %292 = vmatpush1.msra.mxu0 0.0
    %293 = vmatprep.subr.mxu0 0.0
    %294 = vmatpush1.msra.mxu0 0.0
    %295 = vmatprep.subr.mxu0 0.0
    %296 = vmatpush1.msra.mxu0 0.0
    %297 = vmatprep.subr.mxu0 0.0
    %298 = vmatpush1.msra.mxu0 0.0
    %299 = vmatprep.subr.mxu0 0.0
    %300 = vmatpush1.msra.mxu0 0.0
    %301 = vmatprep.subr.mxu0 0.0
    %302 = vmatpush1.msra.mxu0 0.0
    %303 = vmatprep.subr.mxu0 0.0
    %304 = vmatpush1.msra.mxu0 0.0
    %305 = vmatprep.subr.mxu0 0.0
    %306 = vmatpush1.msra.mxu0 %v204
    %307 = vmatprep.subr.mxu0 0.0
    %308 = vmatpush1.msra.mxu0 %v203
    %309 = vmatprep.subr.mxu0 0.0
    %310 = vmatpush1.msra.mxu0 %v202
    %311 = vmatprep.subr.mxu0 0.0
    %312 = vmatpush1.msra.mxu0 %v201
    %313 = vmatprep.subr.mxu0 0.0
    %314 = vmatpush2.msra.mxu0 0.0
    %315 = vmatprep.subr.mxu0 0.0
    %316 = vmatpush2.msra.mxu0 0.0
    %317 = vmatprep.subr.mxu0 0.0
    %318 = vmatpush2.msra.mxu0 0.0
    %319 = vmatprep.subr.mxu0 0.0
    %320 = vmatpush2.msra.mxu0 0.0
    %321 = vmatprep.subr.mxu0 0.0
    %322 = vmatpush2.msra.mxu0 0.0
    %323 = vmatprep.subr.mxu0 0.0
    %324 = vmatpush2.msra.mxu0 0.0
    %325 = vmatprep.subr.mxu0 0.0
    %326 = vmatpush2.msra.mxu0 0.0
    %327 = vmatprep.subr.mxu0 0.0
    %328 = vmatpush2.msra.mxu0 0.0
    %329 = vmatprep.subr.mxu0 0.0
    %330 = vmatpush2.msra.mxu0 0.0
    %331 = vmatprep.subr.mxu0 0.0
    %332 = vmatpush2.msra.mxu0 0.0
    %333 = vmatprep.subr.mxu0 0.0
    %334 = vmatpush2.msra.mxu0 0.0
    %335 = vmatprep.subr.mxu0 0.0
    %336 = vmatpush2.msra.mxu0 0.0
    %337 = vmatprep.subr.mxu0 0.0
    %338 = vmatpush2.msra.mxu0 0.0
    %339 = vmatprep.subr.mxu0 0.0
    %340 = vmatpush2.msra.mxu0 0.0
    %341 = vmatprep.subr.mxu0 0.0
    %342 = vmatpush2.msra.mxu0 0.0
    %343 = vmatprep.subr.mxu0 0.0
    %344 = vmatpush2.msra.mxu0 0.0
    %345 = vmatprep.mubr.f32.mxu0 0.0
    %346 = vmatmul.mubr.f32.gmra.mxu0 %v207
    %v347 = vpop.f32.mrf.mxu0
    %v348 = vadd.f32 0.0, %v347
    %v349 = vpop.f32.mrf.mxu0
    %350 = vdwg.mxu0
    %352 = vrot.lane.b32.xlu0 %v348, 3
    %v353 = vpop.permute.xlu0 %352
    %vm355 = vcmask 43032
    %356 = vst.msk [vmem:[%s3] sm:$0x7] %vm355, %v353
  $region21: #{tpu_custom_call.1} parent=0 // pred_fallthru
    _
  // Predicated region
  $region22: #{tpu_custom_call.1} parent=0 // pred_check
    _
  $region23: #{tpu_custom_call.1} parent=0 // pred_check_branch
    %358 = sbr.rel (0) target = $region25
  $region24: #{tpu_custom_call.1} parent=0 // pred_region
    _
  $region25: #{tpu_custom_call.1} parent=0 // pred_fallthru
    _
  // Predicated region
  $region26: #{tpu_custom_call.1} parent=0 // pred_check
    _
  $region27: #{tpu_custom_call.1} parent=0 // pred_check_branch
    %360 = sbr.rel (0) target = $region29
  $region28: #{tpu_custom_call.1} parent=0 // pred_region
    _
  $region29: #{tpu_custom_call.1} parent=0 // pred_fallthru
    _

</llo_original>
